<compile_context>
chip_gen: v5e
topology: v5e:2x2
jax: 0.10.0
libtpu: 0.0.40
codegen_flags: <defaults>
</compile_context>

<pallas_src>
from functools import partial

import jax
import jax.numpy as jnp
from jax.experimental import pallas as pl
from jax.experimental.pallas import tpu as pltpu

C_PAD = 128        # lane-dense tag-head width (tagset padded to one full vreg of lanes)
BATCH_BLOCK = 8    # sentences per kernel invocation (fills all 8 sublanes)


def lstm_tagger_kernel(emb_ref, wih_ref, b_ref, whh_ref, wtag_ref, btag_ref, out_ref,
                       *, seq_len):
    T = seq_len
    BB = emb_ref.shape[0] // T          # batch block (rows are (t, b)-major: t*BB + b)
    H = whh_ref.shape[0]

    # ---- Hoisted input projection: one (T*BB, E) @ (E, 4H) MXU matmul + bias. --------
    xg = (jnp.dot(emb_ref[...], wih_ref[...], preferred_element_type=jnp.float32)
          + b_ref[...])                                     # (T*BB, 4H), gates i,f,g,o

    # Recurrent weights loaded ONCE, register-resident across the unrolled loop.
    w_hh = whh_ref[...]                                     # (H, 4H)

    h = jnp.zeros((BB, H), jnp.float32)
    c = jnp.zeros((BB, H), jnp.float32)
    hs = []

    # ---- Serial LSTM recurrence, fully unrolled (T is static and small). -------------
    for t in range(T):
        # Unmasked, sublane-aligned (BB, 4H) row block + ONE merged gate matmul.
        g_all = (xg[t * BB:(t + 1) * BB, :]
                 + jnp.dot(h, w_hh, preferred_element_type=jnp.float32))   # (BB, 4H)
        sig = jax.nn.sigmoid(g_all)                         # one EUP pass, full 4H lanes
        tnh = jnp.tanh(g_all)                               # one EUP pass, full 4H lanes
        i_g = sig[:, 0 * H:1 * H]
        f_g = sig[:, 1 * H:2 * H]
        g_g = tnh[:, 2 * H:3 * H]
        o_g = sig[:, 3 * H:4 * H]
        c = f_g * c + i_g * g_g
        h = o_g * jnp.tanh(c)
        hs.append(h)                                        # stays in registers

    # ---- Post-loop tag head + batched log_softmax, one lane-dense store. -------------
    hs_all = jnp.concatenate(hs, axis=0)                    # (T*BB, H), no VMEM round trip
    logits = (jnp.dot(hs_all, wtag_ref[...], preferred_element_type=jnp.float32)
              + btag_ref[...])                              # (T*BB, 128); pad lanes ~ -1e30
    m = jnp.max(logits, axis=-1, keepdims=True)
    z = logits - m
    lse = jnp.log(jnp.sum(jnp.exp(z), axis=-1, keepdims=True))
    out_ref[...] = z - lse                                  # single unmasked (T*BB, 128) store


def pack_params(emb_table, w_ih, w_hh, b, w_tag, b_tag):
    """One-time layout plumbing (amortized at parameter-load time, not per call)."""
    H, C = w_tag.shape
    w_tag_p = jnp.zeros((H, C_PAD), jnp.float32).at[:, :C].set(w_tag)
    b_tag_p = jnp.full((1, C_PAD), -1e30, jnp.float32).at[:, :C].set(b_tag)
    return dict(emb_table=emb_table, w_ih=w_ih, w_hh=w_hh, b=b,
                w_tag_p=w_tag_p, b_tag_p=b_tag_p, tagset_size=C)


def lstm_tagger_forward(sentences, packed):
    """sentences: (B, T) int32 (B a multiple of BATCH_BLOCK). Returns (B, T, C) log-probs.

    Each sentence is an independent LSTM with zero-initialized hidden state, exactly
    matching the PyTorch forward (which runs batch=1); batching just fills sublanes.
    """
    emb_table = packed["emb_table"]
    w_ih, w_hh, b = packed["w_ih"], packed["w_hh"], packed["b"]
    w_tag_p, b_tag_p = packed["w_tag_p"], packed["b_tag_p"]
    C = packed["tagset_size"]

    B, T = sentences.shape
    E = emb_table.shape[1]
    H = w_hh.shape[0]
    BB = BATCH_BLOCK
    assert B % BB == 0, "batch must be a multiple of BATCH_BLOCK"
    nb = B // BB

    # Embedding gather + (t, b)-major re-layout: tiny plain-JAX glue outside the kernel.
    embeds = emb_table[sentences].astype(jnp.float32)               # (B, T, E)
    emb_blk = (embeds.reshape(nb, BB, T, E)
                     .transpose(0, 2, 1, 3)
                     .reshape(nb, T * BB, E))                       # row = t*BB + j

    out = pl.pallas_call(
        partial(lstm_tagger_kernel, seq_len=T),
        out_shape=jax.ShapeDtypeStruct((nb, T * BB, C_PAD), jnp.float32),
        grid=(nb,),
        in_specs=[
            pl.BlockSpec((None, T * BB, E), lambda i: (i, 0, 0)),   # embeddings block
            pl.BlockSpec((E, 4 * H), lambda i: (0, 0)),             # W_ih
            pl.BlockSpec((1, 4 * H), lambda i: (0, 0)),             # b (= b_ih + b_hh)
            pl.BlockSpec((H, 4 * H), lambda i: (0, 0)),             # W_hh
            pl.BlockSpec((H, C_PAD), lambda i: (0, 0)),             # W_tag (lane-padded)
            pl.BlockSpec((1, C_PAD), lambda i: (0, 0)),             # b_tag (lane-padded)
        ],
        out_specs=pl.BlockSpec((None, T * BB, C_PAD), lambda i: (i, 0, 0)),
        compiler_params=pltpu.CompilerParams(
            dimension_semantics=("parallel",)),                     # 2-TC sharding on v7x
    )(emb_blk, w_ih, b, w_hh, w_tag_p, b_tag_p)

    # Un-block and drop the padded tag lanes (they hold garbage by design).
    scores = (out[:, :, :C]
              .reshape(nb, T, BB, C)
              .transpose(0, 2, 1, 3)
              .reshape(B, T, C))
    return scores


def reference_forward(sentences, emb_table, w_ih, w_hh, b, w_tag, b_tag):
    """Pure-JAX reference of the PyTorch forward semantics (per-sentence LSTM)."""
    B, T = sentences.shape
    H = w_hh.shape[0]
    embeds = emb_table[sentences].astype(jnp.float32)               # (B, T, E)
    x_tbe = jnp.transpose(embeds, (1, 0, 2))                        # (T, B, E)

    def step(carry, x_t):
        h, c = carry
        gates = x_t @ w_ih + h @ w_hh + b
        i_g = jax.nn.sigmoid(gates[:, 0 * H:1 * H])
        f_g = jax.nn.sigmoid(gates[:, 1 * H:2 * H])
        g_g = jnp.tanh(gates[:, 2 * H:3 * H])
        o_g = jax.nn.sigmoid(gates[:, 3 * H:4 * H])
        c = f_g * c + i_g * g_g
        h = o_g * jnp.tanh(c)
        return (h, c), h

    h0 = jnp.zeros((B, H), jnp.float32)
    c0 = jnp.zeros((B, H), jnp.float32)
    _, hs = jax.lax.scan(step, (h0, c0), x_tbe)                     # (T, B, H)
    logits = hs @ w_tag + b_tag                                     # (T, B, C)
    return jnp.transpose(jax.nn.log_softmax(logits, axis=-1), (1, 0, 2))


def make_params(key, vocab_size, embedding_dim, hidden_dim, tagset_size):
    ks = jax.random.split(key, 6)
    scale = 1.0 / jnp.sqrt(hidden_dim)
    emb_table = jax.random.normal(ks[0], (vocab_size, embedding_dim), jnp.float32)
    w_ih = jax.random.uniform(ks[1], (embedding_dim, 4 * hidden_dim), jnp.float32,
                              -scale, scale)
    w_hh = jax.random.uniform(ks[2], (hidden_dim, 4 * hidden_dim), jnp.float32,
                              -scale, scale)
    b = jax.random.uniform(ks[3], (1, 4 * hidden_dim), jnp.float32, -scale, scale)
    w_tag = jax.random.uniform(ks[4], (hidden_dim, tagset_size), jnp.float32,
                               -scale, scale)
    b_tag = jax.random.uniform(ks[5], (1, tagset_size), jnp.float32, -scale, scale)
    return emb_table, w_ih, w_hh, b, w_tag, b_tag


if __name__ == "__main__":
    # Small deterministic configuration, same structure as the PyTorch module
    # (embedding -> LSTM -> Linear -> log_softmax, 9 tags). Batched to fill sublanes.
    SEQ_LEN = 8
    EMBEDDING_DIM = 32
    HIDDEN_DIM = 32        # 4H = 128 -> one full vreg of lanes per recurrent step
    VOCAB_SIZE = 50
    TAGSET_SIZE = 9
    BATCH = 16             # 2 batch blocks of 8 -> grid=(2,), "parallel" axis

    key = jax.random.PRNGKey(0)
    k_params, k_sent = jax.random.split(key)
    raw = make_params(k_params, VOCAB_SIZE, EMBEDDING_DIM, HIDDEN_DIM, TAGSET_SIZE)
    packed = pack_params(*raw)     # one-time layout plumbing (amortized across calls)

    sentences = jax.random.randint(k_sent, (BATCH, SEQ_LEN), 0, VOCAB_SIZE,
                                   dtype=jnp.int32)

    tag_scores = lstm_tagger_forward(sentences, packed)
    tag_scores = jax.block_until_ready(tag_scores)

    ref = reference_forward(sentences, *raw)
    assert tag_scores.shape == (BATCH, SEQ_LEN, TAGSET_SIZE)
    assert jnp.allclose(tag_scores, ref, atol=1e-4, rtol=1e-4), "mismatch vs JAX reference"

    print("KERNEL_OK")
</pallas_src>

<mosaic_0001>
module attributes {stable_mosaic.version = 11 : i64} {
  func.func @lstm_tagger_kernel(%arg0: i32, %arg1: memref<1x64x32xf32, #tpu.memory_space<vmem>>, %arg2: memref<32x128xf32, #tpu.memory_space<vmem>>, %arg3: memref<1x128xf32, #tpu.memory_space<vmem>>, %arg4: memref<32x128xf32, #tpu.memory_space<vmem>>, %arg5: memref<32x128xf32, #tpu.memory_space<vmem>>, %arg6: memref<1x128xf32, #tpu.memory_space<vmem>>, %arg7: memref<1x64x128xf32, #tpu.memory_space<vmem>>) attributes {dimension_semantics = [#tpu.dimension_semantics<parallel>], iteration_bounds = array<i64: 2>, scalar_prefetch = 0 : i64, scratch_operands = 0 : i64, tpu.core_type = #tpu.core_type<tc>, window_params = [{transform_indices = @transform_0, window_bounds = array<i64: 1, 64, 32>}, {pipeline_mode = #tpu.pipeline_mode<synchronous>, transform_indices = @transform_1, window_bounds = array<i64: 32, 128>}, {pipeline_mode = #tpu.pipeline_mode<synchronous>, transform_indices = @transform_2, window_bounds = array<i64: 1, 128>}, {pipeline_mode = #tpu.pipeline_mode<synchronous>, transform_indices = @transform_3, window_bounds = array<i64: 32, 128>}, {pipeline_mode = #tpu.pipeline_mode<synchronous>, transform_indices = @transform_4, window_bounds = array<i64: 32, 128>}, {pipeline_mode = #tpu.pipeline_mode<synchronous>, transform_indices = @transform_5, window_bounds = array<i64: 1, 128>}, {transform_indices = @transform_6, window_bounds = array<i64: 1, 64, 128>}]} {
    %c0 = arith.constant 0 : index
    %c0_0 = arith.constant 0 : index
    %c0_1 = arith.constant 0 : index
    %0 = vector.load %arg1[%c0, %c0_0, %c0_1] : memref<1x64x32xf32, #tpu.memory_space<vmem>>, vector<1x64x32xf32>
    %1 = vector.shape_cast %0 : vector<1x64x32xf32> to vector<64x32xf32>
    %c0_2 = arith.constant 0 : index
    %c0_3 = arith.constant 0 : index
    %2 = vector.load %arg2[%c0_2, %c0_3] : memref<32x128xf32, #tpu.memory_space<vmem>>, vector<32x128xf32>
    %cst = arith.constant dense<0.000000e+00> : vector<64x128xf32>
    %3 = tpu.matmul %1, %2, %cst {dimension_numbers = #tpu.dot_dimension_numbers<[1], [0], [0], [1], [0, 0, 1, 1], [], []>} : vector<64x32xf32>, vector<32x128xf32>, vector<64x128xf32> -> vector<64x128xf32>
    %c0_4 = arith.constant 0 : index
    %c0_5 = arith.constant 0 : index
    %4 = vector.load %arg3[%c0_4, %c0_5] : memref<1x128xf32, #tpu.memory_space<vmem>>, vector<1x128xf32>
    %5 = vector.broadcast %4 : vector<1x128xf32> to vector<64x128xf32>
    %6 = arith.addf %3, %5 : vector<64x128xf32>
    %c0_6 = arith.constant 0 : index
    %c0_7 = arith.constant 0 : index
    %7 = vector.load %arg4[%c0_6, %c0_7] : memref<32x128xf32, #tpu.memory_space<vmem>>, vector<32x128xf32>
    %cst_8 = arith.constant 0.000000e+00 : f32
    %8 = vector.broadcast %cst_8 : f32 to vector<8x32xf32>
    %cst_9 = arith.constant 0.000000e+00 : f32
    %9 = vector.broadcast %cst_9 : f32 to vector<8x32xf32>
    %10 = vector.extract_strided_slice %6 {offsets = [0, 0], sizes = [8, 128], strides = [1, 1]} : vector<64x128xf32> to vector<8x128xf32>
    %cst_10 = arith.constant dense<0.000000e+00> : vector<8x128xf32>
    %11 = tpu.matmul %8, %7, %cst_10 {dimension_numbers = #tpu.dot_dimension_numbers<[1], [0], [0], [1], [0, 0, 1, 1], [], []>} : vector<8x32xf32>, vector<32x128xf32>, vector<8x128xf32> -> vector<8x128xf32>
    %12 = arith.addf %10, %11 : vector<8x128xf32>
    %13 = arith.negf %12 : vector<8x128xf32>
    %14 = math.exp %13 : vector<8x128xf32>
    %cst_11 = arith.constant 1.000000e+00 : f32
    %15 = vector.broadcast %cst_11 : f32 to vector<8x128xf32>
    %16 = arith.addf %15, %14 : vector<8x128xf32>
    %17 = arith.divf %15, %16 : vector<8x128xf32>
    %18 = math.tanh %12 : vector<8x128xf32>
    %19 = vector.extract_strided_slice %17 {offsets = [0, 0], sizes = [8, 32], strides = [1, 1]} : vector<8x128xf32> to vector<8x32xf32>
    %20 = vector.extract_strided_slice %17 {offsets = [0, 32], sizes = [8, 32], strides = [1, 1]} : vector<8x128xf32> to vector<8x32xf32>
    %21 = vector.extract_strided_slice %18 {offsets = [0, 64], sizes = [8, 32], strides = [1, 1]} : vector<8x128xf32> to vector<8x32xf32>
    %22 = vector.extract_strided_slice %17 {offsets = [0, 96], sizes = [8, 32], strides = [1, 1]} : vector<8x128xf32> to vector<8x32xf32>
    %23 = arith.mulf %20, %9 : vector<8x32xf32>
    %24 = arith.mulf %19, %21 : vector<8x32xf32>
    %25 = arith.addf %23, %24 : vector<8x32xf32>
    %26 = math.tanh %25 : vector<8x32xf32>
    %27 = arith.mulf %22, %26 : vector<8x32xf32>
    %28 = vector.extract_strided_slice %6 {offsets = [8, 0], sizes = [8, 128], strides = [1, 1]} : vector<64x128xf32> to vector<8x128xf32>
    %cst_12 = arith.constant dense<0.000000e+00> : vector<8x128xf32>
    %29 = tpu.matmul %27, %7, %cst_12 {dimension_numbers = #tpu.dot_dimension_numbers<[1], [0], [0], [1], [0, 0, 1, 1], [], []>} : vector<8x32xf32>, vector<32x128xf32>, vector<8x128xf32> -> vector<8x128xf32>
    %30 = arith.addf %28, %29 : vector<8x128xf32>
    %31 = arith.negf %30 : vector<8x128xf32>
    %32 = math.exp %31 : vector<8x128xf32>
    %cst_13 = arith.constant 1.000000e+00 : f32
    %33 = vector.broadcast %cst_13 : f32 to vector<8x128xf32>
    %34 = arith.addf %33, %32 : vector<8x128xf32>
    %35 = arith.divf %33, %34 : vector<8x128xf32>
    %36 = math.tanh %30 : vector<8x128xf32>
    %37 = vector.extract_strided_slice %35 {offsets = [0, 0], sizes = [8, 32], strides = [1, 1]} : vector<8x128xf32> to vector<8x32xf32>
    %38 = vector.extract_strided_slice %35 {offsets = [0, 32], sizes = [8, 32], strides = [1, 1]} : vector<8x128xf32> to vector<8x32xf32>
    %39 = vector.extract_strided_slice %36 {offsets = [0, 64], sizes = [8, 32], strides = [1, 1]} : vector<8x128xf32> to vector<8x32xf32>
    %40 = vector.extract_strided_slice %35 {offsets = [0, 96], sizes = [8, 32], strides = [1, 1]} : vector<8x128xf32> to vector<8x32xf32>
    %41 = arith.mulf %38, %25 : vector<8x32xf32>
    %42 = arith.mulf %37, %39 : vector<8x32xf32>
    %43 = arith.addf %41, %42 : vector<8x32xf32>
    %44 = math.tanh %43 : vector<8x32xf32>
    %45 = arith.mulf %40, %44 : vector<8x32xf32>
    %46 = vector.extract_strided_slice %6 {offsets = [16, 0], sizes = [8, 128], strides = [1, 1]} : vector<64x128xf32> to vector<8x128xf32>
    %cst_14 = arith.constant dense<0.000000e+00> : vector<8x128xf32>
    %47 = tpu.matmul %45, %7, %cst_14 {dimension_numbers = #tpu.dot_dimension_numbers<[1], [0], [0], [1], [0, 0, 1, 1], [], []>} : vector<8x32xf32>, vector<32x128xf32>, vector<8x128xf32> -> vector<8x128xf32>
    %48 = arith.addf %46, %47 : vector<8x128xf32>
    %49 = arith.negf %48 : vector<8x128xf32>
    %50 = math.exp %49 : vector<8x128xf32>
    %cst_15 = arith.constant 1.000000e+00 : f32
    %51 = vector.broadcast %cst_15 : f32 to vector<8x128xf32>
    %52 = arith.addf %51, %50 : vector<8x128xf32>
    %53 = arith.divf %51, %52 : vector<8x128xf32>
    %54 = math.tanh %48 : vector<8x128xf32>
    %55 = vector.extract_strided_slice %53 {offsets = [0, 0], sizes = [8, 32], strides = [1, 1]} : vector<8x128xf32> to vector<8x32xf32>
    %56 = vector.extract_strided_slice %53 {offsets = [0, 32], sizes = [8, 32], strides = [1, 1]} : vector<8x128xf32> to vector<8x32xf32>
    %57 = vector.extract_strided_slice %54 {offsets = [0, 64], sizes = [8, 32], strides = [1, 1]} : vector<8x128xf32> to vector<8x32xf32>
    %58 = vector.extract_strided_slice %53 {offsets = [0, 96], sizes = [8, 32], strides = [1, 1]} : vector<8x128xf32> to vector<8x32xf32>
    %59 = arith.mulf %56, %43 : vector<8x32xf32>
    %60 = arith.mulf %55, %57 : vector<8x32xf32>
    %61 = arith.addf %59, %60 : vector<8x32xf32>
    %62 = math.tanh %61 : vector<8x32xf32>
    %63 = arith.mulf %58, %62 : vector<8x32xf32>
    %64 = vector.extract_strided_slice %6 {offsets = [24, 0], sizes = [8, 128], strides = [1, 1]} : vector<64x128xf32> to vector<8x128xf32>
    %cst_16 = arith.constant dense<0.000000e+00> : vector<8x128xf32>
    %65 = tpu.matmul %63, %7, %cst_16 {dimension_numbers = #tpu.dot_dimension_numbers<[1], [0], [0], [1], [0, 0, 1, 1], [], []>} : vector<8x32xf32>, vector<32x128xf32>, vector<8x128xf32> -> vector<8x128xf32>
    %66 = arith.addf %64, %65 : vector<8x128xf32>
    %67 = arith.negf %66 : vector<8x128xf32>
    %68 = math.exp %67 : vector<8x128xf32>
    %cst_17 = arith.constant 1.000000e+00 : f32
    %69 = vector.broadcast %cst_17 : f32 to vector<8x128xf32>
    %70 = arith.addf %69, %68 : vector<8x128xf32>
    %71 = arith.divf %69, %70 : vector<8x128xf32>
    %72 = math.tanh %66 : vector<8x128xf32>
    %73 = vector.extract_strided_slice %71 {offsets = [0, 0], sizes = [8, 32], strides = [1, 1]} : vector<8x128xf32> to vector<8x32xf32>
    %74 = vector.extract_strided_slice %71 {offsets = [0, 32], sizes = [8, 32], strides = [1, 1]} : vector<8x128xf32> to vector<8x32xf32>
    %75 = vector.extract_strided_slice %72 {offsets = [0, 64], sizes = [8, 32], strides = [1, 1]} : vector<8x128xf32> to vector<8x32xf32>
    %76 = vector.extract_strided_slice %71 {offsets = [0, 96], sizes = [8, 32], strides = [1, 1]} : vector<8x128xf32> to vector<8x32xf32>
    %77 = arith.mulf %74, %61 : vector<8x32xf32>
    %78 = arith.mulf %73, %75 : vector<8x32xf32>
    %79 = arith.addf %77, %78 : vector<8x32xf32>
    %80 = math.tanh %79 : vector<8x32xf32>
    %81 = arith.mulf %76, %80 : vector<8x32xf32>
    %82 = vector.extract_strided_slice %6 {offsets = [32, 0], sizes = [8, 128], strides = [1, 1]} : vector<64x128xf32> to vector<8x128xf32>
    %cst_18 = arith.constant dense<0.000000e+00> : vector<8x128xf32>
    %83 = tpu.matmul %81, %7, %cst_18 {dimension_numbers = #tpu.dot_dimension_numbers<[1], [0], [0], [1], [0, 0, 1, 1], [], []>} : vector<8x32xf32>, vector<32x128xf32>, vector<8x128xf32> -> vector<8x128xf32>
    %84 = arith.addf %82, %83 : vector<8x128xf32>
    %85 = arith.negf %84 : vector<8x128xf32>
    %86 = math.exp %85 : vector<8x128xf32>
    %cst_19 = arith.constant 1.000000e+00 : f32
    %87 = vector.broadcast %cst_19 : f32 to vector<8x128xf32>
    %88 = arith.addf %87, %86 : vector<8x128xf32>
    %89 = arith.divf %87, %88 : vector<8x128xf32>
    %90 = math.tanh %84 : vector<8x128xf32>
    %91 = vector.extract_strided_slice %89 {offsets = [0, 0], sizes = [8, 32], strides = [1, 1]} : vector<8x128xf32> to vector<8x32xf32>
    %92 = vector.extract_strided_slice %89 {offsets = [0, 32], sizes = [8, 32], strides = [1, 1]} : vector<8x128xf32> to vector<8x32xf32>
    %93 = vector.extract_strided_slice %90 {offsets = [0, 64], sizes = [8, 32], strides = [1, 1]} : vector<8x128xf32> to vector<8x32xf32>
    %94 = vector.extract_strided_slice %89 {offsets = [0, 96], sizes = [8, 32], strides = [1, 1]} : vector<8x128xf32> to vector<8x32xf32>
    %95 = arith.mulf %92, %79 : vector<8x32xf32>
    %96 = arith.mulf %91, %93 : vector<8x32xf32>
    %97 = arith.addf %95, %96 : vector<8x32xf32>
    %98 = math.tanh %97 : vector<8x32xf32>
    %99 = arith.mulf %94, %98 : vector<8x32xf32>
    %100 = vector.extract_strided_slice %6 {offsets = [40, 0], sizes = [8, 128], strides = [1, 1]} : vector<64x128xf32> to vector<8x128xf32>
    %cst_20 = arith.constant dense<0.000000e+00> : vector<8x128xf32>
    %101 = tpu.matmul %99, %7, %cst_20 {dimension_numbers = #tpu.dot_dimension_numbers<[1], [0], [0], [1], [0, 0, 1, 1], [], []>} : vector<8x32xf32>, vector<32x128xf32>, vector<8x128xf32> -> vector<8x128xf32>
    %102 = arith.addf %100, %101 : vector<8x128xf32>
    %103 = arith.negf %102 : vector<8x128xf32>
    %104 = math.exp %103 : vector<8x128xf32>
    %cst_21 = arith.constant 1.000000e+00 : f32
    %105 = vector.broadcast %cst_21 : f32 to vector<8x128xf32>
    %106 = arith.addf %105, %104 : vector<8x128xf32>
    %107 = arith.divf %105, %106 : vector<8x128xf32>
    %108 = math.tanh %102 : vector<8x128xf32>
    %109 = vector.extract_strided_slice %107 {offsets = [0, 0], sizes = [8, 32], strides = [1, 1]} : vector<8x128xf32> to vector<8x32xf32>
    %110 = vector.extract_strided_slice %107 {offsets = [0, 32], sizes = [8, 32], strides = [1, 1]} : vector<8x128xf32> to vector<8x32xf32>
    %111 = vector.extract_strided_slice %108 {offsets = [0, 64], sizes = [8, 32], strides = [1, 1]} : vector<8x128xf32> to vector<8x32xf32>
    %112 = vector.extract_strided_slice %107 {offsets = [0, 96], sizes = [8, 32], strides = [1, 1]} : vector<8x128xf32> to vector<8x32xf32>
    %113 = arith.mulf %110, %97 : vector<8x32xf32>
    %114 = arith.mulf %109, %111 : vector<8x32xf32>
    %115 = arith.addf %113, %114 : vector<8x32xf32>
    %116 = math.tanh %115 : vector<8x32xf32>
    %117 = arith.mulf %112, %116 : vector<8x32xf32>
    %118 = vector.extract_strided_slice %6 {offsets = [48, 0], sizes = [8, 128], strides = [1, 1]} : vector<64x128xf32> to vector<8x128xf32>
    %cst_22 = arith.constant dense<0.000000e+00> : vector<8x128xf32>
    %119 = tpu.matmul %117, %7, %cst_22 {dimension_numbers = #tpu.dot_dimension_numbers<[1], [0], [0], [1], [0, 0, 1, 1], [], []>} : vector<8x32xf32>, vector<32x128xf32>, vector<8x128xf32> -> vector<8x128xf32>
    %120 = arith.addf %118, %119 : vector<8x128xf32>
    %121 = arith.negf %120 : vector<8x128xf32>
    %122 = math.exp %121 : vector<8x128xf32>
    %cst_23 = arith.constant 1.000000e+00 : f32
    %123 = vector.broadcast %cst_23 : f32 to vector<8x128xf32>
    %124 = arith.addf %123, %122 : vector<8x128xf32>
    %125 = arith.divf %123, %124 : vector<8x128xf32>
    %126 = math.tanh %120 : vector<8x128xf32>
    %127 = vector.extract_strided_slice %125 {offsets = [0, 0], sizes = [8, 32], strides = [1, 1]} : vector<8x128xf32> to vector<8x32xf32>
    %128 = vector.extract_strided_slice %125 {offsets = [0, 32], sizes = [8, 32], strides = [1, 1]} : vector<8x128xf32> to vector<8x32xf32>
    %129 = vector.extract_strided_slice %126 {offsets = [0, 64], sizes = [8, 32], strides = [1, 1]} : vector<8x128xf32> to vector<8x32xf32>
    %130 = vector.extract_strided_slice %125 {offsets = [0, 96], sizes = [8, 32], strides = [1, 1]} : vector<8x128xf32> to vector<8x32xf32>
    %131 = arith.mulf %128, %115 : vector<8x32xf32>
    %132 = arith.mulf %127, %129 : vector<8x32xf32>
    %133 = arith.addf %131, %132 : vector<8x32xf32>
    %134 = math.tanh %133 : vector<8x32xf32>
    %135 = arith.mulf %130, %134 : vector<8x32xf32>
    %136 = vector.extract_strided_slice %6 {offsets = [56, 0], sizes = [8, 128], strides = [1, 1]} : vector<64x128xf32> to vector<8x128xf32>
    %cst_24 = arith.constant dense<0.000000e+00> : vector<8x128xf32>
    %137 = tpu.matmul %135, %7, %cst_24 {dimension_numbers = #tpu.dot_dimension_numbers<[1], [0], [0], [1], [0, 0, 1, 1], [], []>} : vector<8x32xf32>, vector<32x128xf32>, vector<8x128xf32> -> vector<8x128xf32>
    %138 = arith.addf %136, %137 : vector<8x128xf32>
    %139 = arith.negf %138 : vector<8x128xf32>
    %140 = math.exp %139 : vector<8x128xf32>
    %cst_25 = arith.constant 1.000000e+00 : f32
    %141 = vector.broadcast %cst_25 : f32 to vector<8x128xf32>
    %142 = arith.addf %141, %140 : vector<8x128xf32>
    %143 = arith.divf %141, %142 : vector<8x128xf32>
    %144 = math.tanh %138 : vector<8x128xf32>
    %145 = vector.extract_strided_slice %143 {offsets = [0, 0], sizes = [8, 32], strides = [1, 1]} : vector<8x128xf32> to vector<8x32xf32>
    %146 = vector.extract_strided_slice %143 {offsets = [0, 32], sizes = [8, 32], strides = [1, 1]} : vector<8x128xf32> to vector<8x32xf32>
    %147 = vector.extract_strided_slice %144 {offsets = [0, 64], sizes = [8, 32], strides = [1, 1]} : vector<8x128xf32> to vector<8x32xf32>
    %148 = vector.extract_strided_slice %143 {offsets = [0, 96], sizes = [8, 32], strides = [1, 1]} : vector<8x128xf32> to vector<8x32xf32>
    %149 = arith.mulf %146, %133 : vector<8x32xf32>
    %150 = arith.mulf %145, %147 : vector<8x32xf32>
    %151 = arith.addf %149, %150 : vector<8x32xf32>
    %152 = math.tanh %151 : vector<8x32xf32>
    %153 = arith.mulf %148, %152 : vector<8x32xf32>
    %154 = tpu.concatenate %27, %45, %63, %81, %99, %117, %135, %153 in 0 : vector<8x32xf32>, vector<8x32xf32>, vector<8x32xf32>, vector<8x32xf32>, vector<8x32xf32>, vector<8x32xf32>, vector<8x32xf32>, vector<8x32xf32> -> vector<64x32xf32>
    %c0_26 = arith.constant 0 : index
    %c0_27 = arith.constant 0 : index
    %155 = vector.load %arg5[%c0_26, %c0_27] : memref<32x128xf32, #tpu.memory_space<vmem>>, vector<32x128xf32>
    %cst_28 = arith.constant dense<0.000000e+00> : vector<64x128xf32>
    %156 = tpu.matmul %154, %155, %cst_28 {dimension_numbers = #tpu.dot_dimension_numbers<[1], [0], [0], [1], [0, 0, 1, 1], [], []>} : vector<64x32xf32>, vector<32x128xf32>, vector<64x128xf32> -> vector<64x128xf32>
    %c0_29 = arith.constant 0 : index
    %c0_30 = arith.constant 0 : index
    %157 = vector.load %arg6[%c0_29, %c0_30] : memref<1x128xf32, #tpu.memory_space<vmem>>, vector<1x128xf32>
    %158 = vector.broadcast %157 : vector<1x128xf32> to vector<64x128xf32>
    %159 = arith.addf %156, %158 : vector<64x128xf32>
    %cst_31 = arith.constant dense<0xFF800000> : vector<64xf32>
    %160 = vector.multi_reduction <maximumf>, %159, %cst_31 [1] : vector<64x128xf32> to vector<64xf32>
    %161 = vector.shape_cast %160 : vector<64xf32> to vector<64x1xf32>
    %162 = vector.broadcast %161 : vector<64x1xf32> to vector<64x128xf32>
    %163 = arith.subf %159, %162 : vector<64x128xf32>
    %164 = math.exp %163 : vector<64x128xf32>
    %cst_32 = arith.constant dense<0.000000e+00> : vector<64xf32>
    %165 = vector.multi_reduction <add>, %164, %cst_32 [1] : vector<64x128xf32> to vector<64xf32>
    %166 = vector.shape_cast %165 : vector<64xf32> to vector<64x1xf32>
    %167 = math.log %166 : vector<64x1xf32>
    %168 = vector.broadcast %167 : vector<64x1xf32> to vector<64x128xf32>
    %169 = arith.subf %163, %168 : vector<64x128xf32>
    %c0_33 = arith.constant 0 : index
    %c0_34 = arith.constant 0 : index
    %c0_35 = arith.constant 0 : index
    %170 = vector.load %arg7[%c0_33, %c0_34, %c0_35] : memref<1x64x128xf32, #tpu.memory_space<vmem>>, vector<1x64x128xf32>
    %171 = vector.shape_cast %170 : vector<1x64x128xf32> to vector<64x128xf32>
    %172 = vector.shape_cast %169 : vector<64x128xf32> to vector<1x64x128xf32>
    tpu.vector_store %arg7[%c0_33, %c0_34, %c0_35], %172 {strides = array<i32>} : memref<1x64x128xf32, #tpu.memory_space<vmem>>, vector<1x64x128xf32>,
    return
  }
  func.func @transform_0(%arg0: i32) -> (i32, i32, i32) {
    %c0_i32 = arith.constant 0 : i32
    %c0_i32_0 = arith.constant 0 : i32
    %c0_i32_1 = arith.constant 0 : i32
    return %arg0, %c0_i32, %c0_i32_0 : i32, i32, i32
  }
  func.func @transform_1(%arg0: i32) -> (i32, i32) {
    %c0_i32 = arith.constant 0 : i32
    %c0_i32_0 = arith.constant 0 : i32
    %c0_i32_1 = arith.constant 0 : i32
    return %c0_i32, %c0_i32_0 : i32, i32
  }
  func.func @transform_2(%arg0: i32) -> (i32, i32) {
    %c0_i32 = arith.constant 0 : i32
    %c0_i32_0 = arith.constant 0 : i32
    %c0_i32_1 = arith.constant 0 : i32
    return %c0_i32, %c0_i32_0 : i32, i32
  }
  func.func @transform_3(%arg0: i32) -> (i32, i32) {
    %c0_i32 = arith.constant 0 : i32
    %c0_i32_0 = arith.constant 0 : i32
    %c0_i32_1 = arith.constant 0 : i32
    return %c0_i32, %c0_i32_0 : i32, i32
  }
  func.func @transform_4(%arg0: i32) -> (i32, i32) {
    %c0_i32 = arith.constant 0 : i32
    %c0_i32_0 = arith.constant 0 : i32
    %c0_i32_1 = arith.constant 0 : i32
    return %c0_i32, %c0_i32_0 : i32, i32
  }
  func.func @transform_5(%arg0: i32) -> (i32, i32) {
    %c0_i32 = arith.constant 0 : i32
    %c0_i32_0 = arith.constant 0 : i32
    %c0_i32_1 = arith.constant 0 : i32
    return %c0_i32, %c0_i32_0 : i32, i32
  }
  func.func @transform_6(%arg0: i32) -> (i32, i32, i32) {
    %c0_i32 = arith.constant 0 : i32
    %c0_i32_0 = arith.constant 0 : i32
    %c0_i32_1 = arith.constant 0 : i32
    return %arg0, %c0_i32, %c0_i32_0 : i32, i32, i32
  }
}

</mosaic_0001>

<llo_original>
// kernel: tpu_custom_call.1
$region0: #{tpu_custom_call.1}
  #allocation0 [shape = 'u32[]', space=smem, size = 0x4, offset = 0x4, fixed_abs, tag = 'smem constant byte address 0x4 - core index']
  #allocation1 [shape = 'u32[72,128]{1,0:T(1,128)}', space=vmem, size = 0x9000, scoped, tag = 'internal scratch']
  %s0 = inlined_call_operand.vmem [shape: f32[2,64,32], index: 0, kind: input, shape index: {}]
  %s1 = inlined_call_operand.vmem [shape: f32[32,128], index: 1, kind: input, shape index: {}]
  %s2 = inlined_call_operand.vmem [shape: f32[1,128], index: 2, kind: input, shape index: {}]
  %s3 = inlined_call_operand.vmem [shape: f32[32,128], index: 3, kind: input, shape index: {}]
  %s4 = inlined_call_operand.vmem [shape: f32[32,128], index: 4, kind: input, shape index: {}]
  %s5 = inlined_call_operand.vmem [shape: f32[1,128], index: 5, kind: input, shape index: {}]
  %s6 = inlined_call_operand.hbm [shape: f32[2,64,128], index: 6, kind: output, shape index: {}]
  %s7 = sld [smem:[#allocation0]]
  $region57: #{tpu_custom_call.1} parent=0
    _
  %s9 = ssub.s32 1, %s7
  %s10 = scalar_select 0, %s9, %s7
  $region1: #{tpu_custom_call.1} parent=0
    #allocation2 [shape = 'u8[65536]{0}', space=vmem, size = 0x10000, scoped, tag = 'output window, operand 0']
    #allocation3 [shape = 's32[2]{0}', space=sflag, size = 0x8, scoped, tag = 'scoped memory for tpu_custom_call.1']
    %11 = vsyncpa [#allocation3], 0
    %s12 = scalar_lea.sflag [#allocation3], 1
    %13 = vsyncpa %s12, 0
    loop: start=0, step=1, limit=4
    $region2: #{tpu_custom_call.1} parent=1 // loop_pre_header
      _
    $region3: #{tpu_custom_call.1} parent=1 // loop_header
      %s15 = sphi 0, %s19
      %p16 = scmp.ge.s32.totalorder %s15, 4
      %s25 = sphi 0, %s27
      %s28 = sphi 0, %s25
      %s29 = sphi 0, %s28
      %s45 = sphi 0, %s29
      %s49 = sphi 0, %s49
      %s51 = sphi 0, %s49
      %s52 = sphi 0, %s51
      %s66 = sphi 0, %s52
      %s70 = sphi 0, %s70
      %s72 = sphi 0, %s70
      %s73 = sphi 0, %s72
      %s87 = sphi 0, %s73
      %s91 = sphi 0, %s91
      %s93 = sphi 0, %s91
      %s94 = sphi 0, %s93
      %s108 = sphi 0, %s94
      %s112 = sphi 0, %s112
      %s114 = sphi 0, %s112
      %s115 = sphi 0, %s114
      %s129 = sphi 0, %s115
      %s133 = sphi 0, %s133
      %s135 = sphi 0, %s133
      %s136 = sphi 0, %s135
      %s150 = sphi 0, %s136
      %s156 = sphi 0, %s158
      %s159 = sphi 0, %s156
      %s160 = sphi 0, %s159
      %s176 = sphi 0, %s160
    $region4: #{tpu_custom_call.1} parent=1 // loop_header_branch
      %18 = sbr.rel (%p16) target = $region8
    $region5: #{tpu_custom_call.1} parent=1 // loop_body
      %s20 = ssub.s32 %s15, 1
      %s21 = ssub.s32 %s15, 2
      %s22 = sadd.s32 %s15, 1
      %s23 = ssub.s32 %s15, %s22
      %p24 = scmp.eq.s32.totalorder %s23, 0
      %s26 = sadd.s32 %s25, 1
      %s27 = scalar_select %p24, %s25, %s26
      %p30 = pneg %p24
      %p31 = scmp.eq.s32.totalorder %s15, 1
      %p32 = por %p30, %p31
      %p33 = scmp.ne.s32.totalorder %s25, %s28
      %p34 = scmp.eq.s32.totalorder %s15, 0
      %p35 = por %p33, %p34
      %p36 = scmp.ne.s32.totalorder %s25, %s28
      %p37 = scmp.eq.s32.totalorder %s20, 1
      %p38 = por %p36, %p37
      %p39 = scmp.ne.s32.totalorder %s28, %s29
      %p40 = scmp.eq.s32.totalorder %s20, 0
      %p41 = por %p39, %p40
      %p42 = scmp.ne.s32.totalorder %s28, %s29
      %p43 = scmp.eq.s32.totalorder %s21, 1
      %p44 = por %p42, %p43
      %p46 = scmp.ne.s32.totalorder %s29, %s45
      %p47 = scmp.eq.s32.totalorder %s21, 0
      %p48 = por %p46, %p47
      %s50 = sadd.s32 %s49, 1
      %p53 = scmp.eq.s32.totalorder %s15, 1
      %p54 = scmp.ne.s32.totalorder %s49, %s51
      %p55 = scmp.eq.s32.totalorder %s15, 0
      %p56 = por %p54, %p55
      %p57 = scmp.ne.s32.totalorder %s49, %s51
      %p58 = scmp.eq.s32.totalorder %s20, 1
      %p59 = por %p57, %p58
      %p60 = scmp.ne.s32.totalorder %s51, %s52
      %p61 = scmp.eq.s32.totalorder %s20, 0
      %p62 = por %p60, %p61
      %p63 = scmp.ne.s32.totalorder %s51, %s52
      %p64 = scmp.eq.s32.totalorder %s21, 1
      %p65 = por %p63, %p64
      %p67 = scmp.ne.s32.totalorder %s52, %s66
      %p68 = scmp.eq.s32.totalorder %s21, 0
      %p69 = por %p67, %p68
      %s71 = sadd.s32 %s70, 1
      %p74 = scmp.eq.s32.totalorder %s15, 1
      %p75 = scmp.ne.s32.totalorder %s70, %s72
      %p76 = scmp.eq.s32.totalorder %s15, 0
      %p77 = por %p75, %p76
      %p78 = scmp.ne.s32.totalorder %s70, %s72
      %p79 = scmp.eq.s32.totalorder %s20, 1
      %p80 = por %p78, %p79
      %p81 = scmp.ne.s32.totalorder %s72, %s73
      %p82 = scmp.eq.s32.totalorder %s20, 0
      %p83 = por %p81, %p82
      %p84 = scmp.ne.s32.totalorder %s72, %s73
      %p85 = scmp.eq.s32.totalorder %s21, 1
      %p86 = por %p84, %p85
      %p88 = scmp.ne.s32.totalorder %s73, %s87
      %p89 = scmp.eq.s32.totalorder %s21, 0
      %p90 = por %p88, %p89
      %s92 = sadd.s32 %s91, 1
      %p95 = scmp.eq.s32.totalorder %s15, 1
      %p96 = scmp.ne.s32.totalorder %s91, %s93
      %p97 = scmp.eq.s32.totalorder %s15, 0
      %p98 = por %p96, %p97
      %p99 = scmp.ne.s32.totalorder %s91, %s93
      %p100 = scmp.eq.s32.totalorder %s20, 1
      %p101 = por %p99, %p100
      %p102 = scmp.ne.s32.totalorder %s93, %s94
      %p103 = scmp.eq.s32.totalorder %s20, 0
      %p104 = por %p102, %p103
      %p105 = scmp.ne.s32.totalorder %s93, %s94
      %p106 = scmp.eq.s32.totalorder %s21, 1
      %p107 = por %p105, %p106
      %p109 = scmp.ne.s32.totalorder %s94, %s108
      %p110 = scmp.eq.s32.totalorder %s21, 0
      %p111 = por %p109, %p110
      %s113 = sadd.s32 %s112, 1
      %p116 = scmp.eq.s32.totalorder %s15, 1
      %p117 = scmp.ne.s32.totalorder %s112, %s114
      %p118 = scmp.eq.s32.totalorder %s15, 0
      %p119 = por %p117, %p118
      %p120 = scmp.ne.s32.totalorder %s112, %s114
      %p121 = scmp.eq.s32.totalorder %s20, 1
      %p122 = por %p120, %p121
      %p123 = scmp.ne.s32.totalorder %s114, %s115
      %p124 = scmp.eq.s32.totalorder %s20, 0
      %p125 = por %p123, %p124
      %p126 = scmp.ne.s32.totalorder %s114, %s115
      %p127 = scmp.eq.s32.totalorder %s21, 1
      %p128 = por %p126, %p127
      %p130 = scmp.ne.s32.totalorder %s115, %s129
      %p131 = scmp.eq.s32.totalorder %s21, 0
      %p132 = por %p130, %p131
      %s134 = sadd.s32 %s133, 1
      %p137 = scmp.eq.s32.totalorder %s15, 1
      %p138 = scmp.ne.s32.totalorder %s133, %s135
      %p139 = scmp.eq.s32.totalorder %s15, 0
      %p140 = por %p138, %p139
      %p141 = scmp.ne.s32.totalorder %s133, %s135
      %p142 = scmp.eq.s32.totalorder %s20, 1
      %p143 = por %p141, %p142
      %p144 = scmp.ne.s32.totalorder %s135, %s136
      %p145 = scmp.eq.s32.totalorder %s20, 0
      %p146 = por %p144, %p145
      %p147 = scmp.ne.s32.totalorder %s135, %s136
      %p148 = scmp.eq.s32.totalorder %s21, 1
      %p149 = por %p147, %p148
      %p151 = scmp.ne.s32.totalorder %s136, %s150
      %p152 = scmp.eq.s32.totalorder %s21, 0
      %p153 = por %p151, %p152
      %s154 = ssub.s32 %s15, %s22
      %p155 = scmp.eq.s32.totalorder %s154, 0
      %s157 = sadd.s32 %s156, 1
      %s158 = scalar_select %p155, %s156, %s157
      %p161 = pneg %p155
      %p162 = scmp.eq.s32.totalorder %s15, 1
      %p163 = por %p161, %p162
      %p164 = scmp.ne.s32.totalorder %s156, %s159
      %p165 = scmp.eq.s32.totalorder %s15, 0
      %p166 = por %p164, %p165
      %p167 = scmp.ne.s32.totalorder %s156, %s159
      %p168 = scmp.eq.s32.totalorder %s20, 1
      %p169 = por %p167, %p168
      %p170 = scmp.ne.s32.totalorder %s159, %s160
      %p171 = scmp.eq.s32.totalorder %s20, 0
      %p172 = por %p170, %p171
      %p173 = scmp.ne.s32.totalorder %s159, %s160
      %p174 = scmp.eq.s32.totalorder %s21, 1
      %p175 = por %p173, %p174
      %p177 = scmp.ne.s32.totalorder %s160, %s176
      %p178 = scmp.eq.s32.totalorder %s21, 0
      %p179 = por %p177, %p178
      %p180 = scmp.le.s32.totalorder 1, %s15
      %p181 = scmp.lt.s32.totalorder %s15, 3
      %p182 = pnand %p180, %p181
      %p183 = pneg %p182
      // Predicated region
      $region9: #{tpu_custom_call.1} parent=5 // pred_check
        _
      $region10: #{tpu_custom_call.1} parent=5 // pred_check_branch
        %185 = sbr.rel (%p182) target = $region12
      $region11: #{tpu_custom_call.1} parent=5 // pred_region
        %s186 = ssub.s32 %s15, 1
        // Predicated region
        $region13: #{tpu_custom_call.1} parent=11 // pred_check
          %p187 = pneg %p62
        $region14: #{tpu_custom_call.1} parent=11 // pred_check_branch
          %189 = sbr.rel (%p187) target = $region16
        $region15: #{tpu_custom_call.1} parent=11 // pred_region
          _
        $region16: #{tpu_custom_call.1} parent=11 // pred_fallthru
          _
        // Predicated region
        $region17: #{tpu_custom_call.1} parent=11 // pred_check
          %p190 = pneg %p83
        $region18: #{tpu_custom_call.1} parent=11 // pred_check_branch
          %192 = sbr.rel (%p190) target = $region20
        $region19: #{tpu_custom_call.1} parent=11 // pred_region
          _
        $region20: #{tpu_custom_call.1} parent=11 // pred_fallthru
          _
        // Predicated region
        $region21: #{tpu_custom_call.1} parent=11 // pred_check
          %p193 = pneg %p104
        $region22: #{tpu_custom_call.1} parent=11 // pred_check_branch
          %195 = sbr.rel (%p193) target = $region24
        $region23: #{tpu_custom_call.1} parent=11 // pred_region
          _
        $region24: #{tpu_custom_call.1} parent=11 // pred_fallthru
          _
        // Predicated region
        $region25: #{tpu_custom_call.1} parent=11 // pred_check
          %p196 = pneg %p125
        $region26: #{tpu_custom_call.1} parent=11 // pred_check_branch
          %198 = sbr.rel (%p196) target = $region28
        $region27: #{tpu_custom_call.1} parent=11 // pred_region
          _
        $region28: #{tpu_custom_call.1} parent=11 // pred_fallthru
          _
        // Predicated region
        $region29: #{tpu_custom_call.1} parent=11 // pred_check
          %p199 = pneg %p146
        $region30: #{tpu_custom_call.1} parent=11 // pred_check_branch
          %201 = sbr.rel (%p199) target = $region32
        $region31: #{tpu_custom_call.1} parent=11 // pred_region
          _
        $region32: #{tpu_custom_call.1} parent=11 // pred_fallthru
          _
      $region12: #{tpu_custom_call.1} parent=5 // pred_fallthru
        _
      %p202 = scmp.lt.s32.totalorder %s15, 2
      // Predicated region
      $region33: #{tpu_custom_call.1} parent=5 // pred_check
        %p203 = pneg %p202
      $region34: #{tpu_custom_call.1} parent=5 // pred_check_branch
        %205 = sbr.rel (%p203) target = $region36
      $region35: #{tpu_custom_call.1} parent=5 // pred_region
        // Predicated region
        $region37: #{tpu_custom_call.1} parent=35 // pred_check
          %p206 = pneg %p35
        $region38: #{tpu_custom_call.1} parent=35 // pred_check_branch
          %208 = sbr.rel (%p206) target = $region40
        $region39: #{tpu_custom_call.1} parent=35 // pred_region
          %p209 = scmp.lt.s32.totalorder %s15, 1
          %s210 = scalar_select %p209, %s15, 1
          %s211 = smul.addr %s210, 8
          %s212 = smul.addr %s211, 8
          %s213 = scalar_lea.vmem %s0, %s212
        $region40: #{tpu_custom_call.1} parent=35 // pred_fallthru
          _
      $region36: #{tpu_custom_call.1} parent=5 // pred_fallthru
        _
      %p214 = scmp.le.s32.totalorder 1, %s15
      %p215 = scmp.lt.s32.totalorder %s15, 3
      %p216 = pnand %p214, %p215
      %p217 = pneg %p216
      // Predicated region
      $region41: #{tpu_custom_call.1} parent=5 // pred_check
        _
      $region42: #{tpu_custom_call.1} parent=5 // pred_check_branch
        %219 = sbr.rel (%p216) target = $region44
      $region43: #{tpu_custom_call.1} parent=5 // pred_region
        %s220 = ssub.s32 %s15, 1
        %p221 = scmp.lt.s32.totalorder %s20, 1
        %s222 = scalar_select %p221, %s20, 1
        %s223 = smul.addr %s222, 8
        %s224 = smul.addr %s223, 8
        %s225 = scalar_lea.vmem %s0, %s224
        %p226 = pneg %p41
        %p227 = pneg %p38
        %p228 = pneg %p62
        %p229 = pneg %p59
        %p230 = pneg %p83
        %p231 = pneg %p80
        %p232 = pneg %p104
        %p233 = pneg %p101
        %p234 = pneg %p125
        %p235 = pneg %p122
        %p236 = pneg %p146
        %p237 = pneg %p143
        %p238 = pneg %p172
        %p239 = pneg %p169
        %s240 = sand.u32 %s159, 1
        %s241 = scalar_lea.sflag [#allocation3], %s240
        %s242 = sand.u32 %s159, 1
        %s243 = smul.addr %s242, 64
        %s244 = scalar_lea.vmem [#allocation2], %s243
        %p245 = scmp.lt.s32.totalorder %s20, 1
        %s246 = scalar_select %p245, %s20, 1
        %s247 = smul.addr %s246, 8
        %s248 = smul.addr %s247, 8
        %s249 = scalar_lea.vmem %s0, %s248
        %v250 = vld [vmem:[%s249] sm:$0xff]
        %v251 = vld [vmem:[%s249 + $0x8] sm:$0xff]
        %v252 = vld [vmem:[%s249 + $0x10] sm:$0xff]
        %v253 = vld [vmem:[%s249 + $0x18] sm:$0xff]
        %v254 = vld [vmem:[%s249 + $0x20] sm:$0xff]
        %v255 = vld [vmem:[%s249 + $0x28] sm:$0xff]
        %v256 = vld [vmem:[%s249 + $0x30] sm:$0xff]
        %v257 = vld [vmem:[%s249 + $0x38] sm:$0xff]
        %v258 = vld [vmem:[%s1] sm:$0xff]
        %v259 = vld [vmem:[%s1 + $0x8] sm:$0xff]
        %v260 = vld [vmem:[%s1 + $0x10] sm:$0xff]
        %v261 = vld [vmem:[%s1 + $0x18] sm:$0xff]
        %v262 = vld [vmem:[%s2] sm:$0x1]
        %v264 = vperm.slane %v262, 0
        %vm266 = vcmask 261120
        %v268 = vsel %vm266, %v250, 0
        %v271 = vsel %vm266, %v251, 0
        %v274 = vsel %vm266, %v252, 0
        %v277 = vsel %vm266, %v253, 0
        %v280 = vsel %vm266, %v254, 0
        %v283 = vsel %vm266, %v255, 0
        %v286 = vsel %vm266, %v256, 0
        %v289 = vsel %vm266, %v257, 0
        %291 = vmatpush.msra.mxu0 0.0
        %292 = vmatpush.msra.mxu0 0.0
        %293 = vmatpush.msra.mxu0 0.0
        %294 = vmatpush.msra.mxu0 0.0
        %295 = vmatpush.msra.mxu0 0.0
        %296 = vmatpush.msra.mxu0 0.0
        %297 = vmatpush.msra.mxu0 0.0
        %298 = vmatpush.msra.mxu0 0.0
        %299 = vmatpush.msra.mxu0 0.0
        %300 = vmatpush.msra.mxu0 0.0
        %301 = vmatpush.msra.mxu0 0.0
        %302 = vmatpush.msra.mxu0 0.0
        %303 = vmatpush.msra.mxu0 %v261
        %304 = vmatpush.msra.mxu0 %v260
        %305 = vmatpush.msra.mxu0 %v259
        %306 = vmatpush.msra.mxu0 %v258
        %307 = vmatmul.f32.gmra.mxu0 %v268
        %v308 = vpop.f32.mrf.mxu0
        %v309 = vadd.f32 %v264, %v308
        %310 = vmatmul.f32.gmra.mxu0 %v271
        %v311 = vpop.f32.mrf.mxu0
        %v312 = vadd.f32 %v264, %v311
        %313 = vmatmul.f32.gmra.mxu0 %v274
        %v314 = vpop.f32.mrf.mxu0
        %v315 = vadd.f32 %v264, %v314
        %316 = vmatmul.f32.gmra.mxu0 %v277
        %v317 = vpop.f32.mrf.mxu0
        %v318 = vadd.f32 %v264, %v317
        %319 = vmatmul.f32.gmra.mxu0 %v280
        %v320 = vpop.f32.mrf.mxu0
        %v321 = vadd.f32 %v264, %v320
        %322 = vmatmul.f32.gmra.mxu0 %v283
        %v323 = vpop.f32.mrf.mxu0
        %v324 = vadd.f32 %v264, %v323
        %325 = vmatmul.f32.gmra.mxu0 %v286
        %v326 = vpop.f32.mrf.mxu0
        %v327 = vadd.f32 %v264, %v326
        %328 = vmatmul.f32.gmra.mxu0 %v289
        %v329 = vpop.f32.mrf.mxu0
        %v330 = vadd.f32 %v264, %v329
        %331 = vdwg.mxu0
        %v332 = vld [vmem:[%s3] sm:$0xff]
        %v333 = vld [vmem:[%s3 + $0x8] sm:$0xff]
        %v334 = vld [vmem:[%s3 + $0x10] sm:$0xff]
        %v335 = vld [vmem:[%s3 + $0x18] sm:$0xff]
        %v337 = vsel %vm266, 0.0, 0
        %339 = vmatpush.msra.mxu0 0.0
        %340 = vmatpush.msra.mxu0 0.0
        %341 = vmatpush.msra.mxu0 0.0
        %342 = vmatpush.msra.mxu0 0.0
        %343 = vmatpush.msra.mxu0 0.0
        %344 = vmatpush.msra.mxu0 0.0
        %345 = vmatpush.msra.mxu0 0.0
        %346 = vmatpush.msra.mxu0 0.0
        %347 = vmatpush.msra.mxu0 0.0
        %348 = vmatpush.msra.mxu0 0.0
        %349 = vmatpush.msra.mxu0 0.0
        %350 = vmatpush.msra.mxu0 0.0
        %351 = vmatpush.msra.mxu0 %v335
        %352 = vmatpush.msra.mxu0 %v334
        %353 = vmatpush.msra.mxu0 %v333
        %354 = vmatpush.msra.mxu0 %v332
        %355 = vmatmul.f32.gmra.mxu0 %v337
        %v356 = vpop.f32.mrf.mxu0
        %v357 = vadd.f32 0.0, %v356
        %358 = vdwg.mxu0
        %v359 = vadd.f32 %v309, %v357
        %v360 = vxor.u32 %v359, 2147483648
        %v361 = vmul.f32 %v360, 1.442695
        %v362 = vpow.pop %v361
        %v363 = vadd.f32 %v362, 1.0
        %v364 = vrcp.pop %v363
        %v365 = vmul.f32 %v363, %v364
        %v366 = vsub.f32 1.0, %v365
        %v367 = vmul.f32 %v364, %v366
        %v368 = vadd.f32 %v364, %v367
        %vm369 = vweird.f32 %v363
        %vm370 = vweird.f32 %v364
        %vm371 = vmor %vm369, %vm370
        %v372 = vsel %vm371, %v364, %v368
        %v373 = vand.u32 2147483647, %v363
        %vm374 = vcmp.eq.f32.partialorder %v373, 8.507059e+37
        %v375 = vand.u32 %v363, 2147483648
        %v376 = vor.u32 1.1754944e-38, %v375
        %v377 = vsel %vm374, %v376, %v372
        %v378 = vmul.f32 1.0, %v377
        %v379 = vtanh.pop %v359
        %v380 = vmul.f32 %v378, 0.0
        %382 = vrot.lane.b32.xlu0 %v379, 64
        %v383 = vpop.permute.xlu0 %382
        %v385 = vmul.f32 %v378, %v383
        %387 = vrot.lane.b32.xlu0 %v385, 32
        %v388 = vpop.permute.xlu0 %387
        %v390 = vadd.f32 %v380, %v388
        %v391 = vtanh.pop %v390
        %393 = vrot.lane.b32.xlu0 %v391, 64
        %v394 = vpop.permute.xlu0 %393
        %v396 = vmul.f32 %v378, %v394
        %398 = vrot.lane.b32.xlu0 %v396, 32
        %v399 = vpop.permute.xlu0 %398
        %v400 = vsel %vm266, %v399, 0
        %402 = vmatpush.msra.mxu0 0.0
        %403 = vmatpush.msra.mxu0 0.0
        %404 = vmatpush.msra.mxu0 0.0
        %405 = vmatpush.msra.mxu0 0.0
        %406 = vmatpush.msra.mxu0 0.0
        %407 = vmatpush.msra.mxu0 0.0
        %408 = vmatpush.msra.mxu0 0.0
        %409 = vmatpush.msra.mxu0 0.0
        %410 = vmatpush.msra.mxu0 0.0
        %411 = vmatpush.msra.mxu0 0.0
        %412 = vmatpush.msra.mxu0 0.0
        %413 = vmatpush.msra.mxu0 0.0
        %414 = vmatpush.msra.mxu0 %v335
        %415 = vmatpush.msra.mxu0 %v334
        %416 = vmatpush.msra.mxu0 %v333
        %417 = vmatpush.msra.mxu0 %v332
        %418 = vmatmul.f32.gmra.mxu0 %v400
        %v419 = vpop.f32.mrf.mxu0
        %v420 = vadd.f32 0.0, %v419
        %421 = vdwg.mxu0
        %v422 = vadd.f32 %v312, %v420
        %v423 = vxor.u32 %v422, 2147483648
        %v424 = vmul.f32 %v423, 1.442695
        %v425 = vpow.pop %v424
        %v426 = vadd.f32 %v425, 1.0
        %v427 = vrcp.pop %v426
        %v428 = vmul.f32 %v426, %v427
        %v429 = vsub.f32 1.0, %v428
        %v430 = vmul.f32 %v427, %v429
        %v431 = vadd.f32 %v427, %v430
        %vm432 = vweird.f32 %v426
        %vm433 = vweird.f32 %v427
        %vm434 = vmor %vm432, %vm433
        %v435 = vsel %vm434, %v427, %v431
        %v436 = vand.u32 2147483647, %v426
        %vm437 = vcmp.eq.f32.partialorder %v436, 8.507059e+37
        %v438 = vand.u32 %v426, 2147483648
        %v439 = vor.u32 1.1754944e-38, %v438
        %v440 = vsel %vm437, %v439, %v435
        %v441 = vmul.f32 1.0, %v440
        %v442 = vtanh.pop %v422
        %v443 = vmul.f32 %v441, %v390
        %445 = vrot.lane.b32.xlu0 %v442, 64
        %v446 = vpop.permute.xlu0 %445
        %v448 = vmul.f32 %v441, %v446
        %450 = vrot.lane.b32.xlu0 %v448, 32
        %v451 = vpop.permute.xlu0 %450
        %v453 = vadd.f32 %v443, %v451
        %v454 = vtanh.pop %v453
        %456 = vrot.lane.b32.xlu0 %v454, 64
        %v457 = vpop.permute.xlu0 %456
        %v459 = vmul.f32 %v441, %v457
        %461 = vrot.lane.b32.xlu0 %v459, 32
        %v462 = vpop.permute.xlu0 %461
        %v463 = vsel %vm266, %v462, 0
        %465 = vmatpush.msra.mxu0 0.0
        %466 = vmatpush.msra.mxu0 0.0
        %467 = vmatpush.msra.mxu0 0.0
        %468 = vmatpush.msra.mxu0 0.0
        %469 = vmatpush.msra.mxu0 0.0
        %470 = vmatpush.msra.mxu0 0.0
        %471 = vmatpush.msra.mxu0 0.0
        %472 = vmatpush.msra.mxu0 0.0
        %473 = vmatpush.msra.mxu0 0.0
        %474 = vmatpush.msra.mxu0 0.0
        %475 = vmatpush.msra.mxu0 0.0
        %476 = vmatpush.msra.mxu0 0.0
        %477 = vmatpush.msra.mxu0 %v335
        %478 = vmatpush.msra.mxu0 %v334
        %479 = vmatpush.msra.mxu0 %v333
        %480 = vmatpush.msra.mxu0 %v332
        %481 = vmatmul.f32.gmra.mxu0 %v463
        %v482 = vpop.f32.mrf.mxu0
        %v483 = vadd.f32 0.0, %v482
        %484 = vdwg.mxu0
        %v485 = vadd.f32 %v315, %v483
        %v486 = vxor.u32 %v485, 2147483648
        %v487 = vmul.f32 %v486, 1.442695
        %v488 = vpow.pop %v487
        %v489 = vadd.f32 %v488, 1.0
        %v490 = vrcp.pop %v489
        %v491 = vmul.f32 %v489, %v490
        %v492 = vsub.f32 1.0, %v491
        %v493 = vmul.f32 %v490, %v492
        %v494 = vadd.f32 %v490, %v493
        %vm495 = vweird.f32 %v489
        %vm496 = vweird.f32 %v490
        %vm497 = vmor %vm495, %vm496
        %v498 = vsel %vm497, %v490, %v494
        %v499 = vand.u32 2147483647, %v489
        %vm500 = vcmp.eq.f32.partialorder %v499, 8.507059e+37
        %v501 = vand.u32 %v489, 2147483648
        %v502 = vor.u32 1.1754944e-38, %v501
        %v503 = vsel %vm500, %v502, %v498
        %v504 = vmul.f32 1.0, %v503
        %v505 = vtanh.pop %v485
        %v506 = vmul.f32 %v504, %v453
        %508 = vrot.lane.b32.xlu0 %v505, 64
        %v509 = vpop.permute.xlu0 %508
        %v511 = vmul.f32 %v504, %v509
        %513 = vrot.lane.b32.xlu0 %v511, 32
        %v514 = vpop.permute.xlu0 %513
        %v516 = vadd.f32 %v506, %v514
        %v517 = vtanh.pop %v516
        %519 = vrot.lane.b32.xlu0 %v517, 64
        %v520 = vpop.permute.xlu0 %519
        %v522 = vmul.f32 %v504, %v520
        %524 = vrot.lane.b32.xlu0 %v522, 32
        %v525 = vpop.permute.xlu0 %524
        %v526 = vsel %vm266, %v525, 0
        %528 = vmatpush.msra.mxu0 0.0
        %529 = vmatpush.msra.mxu0 0.0
        %530 = vmatpush.msra.mxu0 0.0
        %531 = vmatpush.msra.mxu0 0.0
        %532 = vmatpush.msra.mxu0 0.0
        %533 = vmatpush.msra.mxu0 0.0
        %534 = vmatpush.msra.mxu0 0.0
        %535 = vmatpush.msra.mxu0 0.0
        %536 = vmatpush.msra.mxu0 0.0
        %537 = vmatpush.msra.mxu0 0.0
        %538 = vmatpush.msra.mxu0 0.0
        %539 = vmatpush.msra.mxu0 0.0
        %540 = vmatpush.msra.mxu0 %v335
        %541 = vmatpush.msra.mxu0 %v334
        %542 = vmatpush.msra.mxu0 %v333
        %543 = vmatpush.msra.mxu0 %v332
        %544 = vmatmul.f32.gmra.mxu0 %v526
        %v545 = vpop.f32.mrf.mxu0
        %v546 = vadd.f32 0.0, %v545
        %547 = vdwg.mxu0
        %v548 = vadd.f32 %v318, %v546
        %v549 = vxor.u32 %v548, 2147483648
        %v550 = vmul.f32 %v549, 1.442695
        %v551 = vpow.pop %v550
        %v552 = vadd.f32 %v551, 1.0
        %v553 = vrcp.pop %v552
        %v554 = vmul.f32 %v552, %v553
        %v555 = vsub.f32 1.0, %v554
        %v556 = vmul.f32 %v553, %v555
        %v557 = vadd.f32 %v553, %v556
        %vm558 = vweird.f32 %v552
        %vm559 = vweird.f32 %v553
        %vm560 = vmor %vm558, %vm559
        %v561 = vsel %vm560, %v553, %v557
        %v562 = vand.u32 2147483647, %v552
        %vm563 = vcmp.eq.f32.partialorder %v562, 8.507059e+37
        %v564 = vand.u32 %v552, 2147483648
        %v565 = vor.u32 1.1754944e-38, %v564
        %v566 = vsel %vm563, %v565, %v561
        %v567 = vmul.f32 1.0, %v566
        %v568 = vtanh.pop %v548
        %v569 = vmul.f32 %v567, %v516
        %571 = vrot.lane.b32.xlu0 %v568, 64
        %v572 = vpop.permute.xlu0 %571
        %v574 = vmul.f32 %v567, %v572
        %576 = vrot.lane.b32.xlu0 %v574, 32
        %v577 = vpop.permute.xlu0 %576
        %v579 = vadd.f32 %v569, %v577
        %v580 = vtanh.pop %v579
        %582 = vrot.lane.b32.xlu0 %v580, 64
        %v583 = vpop.permute.xlu0 %582
        %v585 = vmul.f32 %v567, %v583
        %587 = vrot.lane.b32.xlu0 %v585, 32
        %v588 = vpop.permute.xlu0 %587
        %v589 = vsel %vm266, %v588, 0
        %591 = vmatpush.msra.mxu0 0.0
        %592 = vmatpush.msra.mxu0 0.0
        %593 = vmatpush.msra.mxu0 0.0
        %594 = vmatpush.msra.mxu0 0.0
        %595 = vmatpush.msra.mxu0 0.0
        %596 = vmatpush.msra.mxu0 0.0
        %597 = vmatpush.msra.mxu0 0.0
        %598 = vmatpush.msra.mxu0 0.0
        %599 = vmatpush.msra.mxu0 0.0
        %600 = vmatpush.msra.mxu0 0.0
        %601 = vmatpush.msra.mxu0 0.0
        %602 = vmatpush.msra.mxu0 0.0
        %603 = vmatpush.msra.mxu0 %v335
        %604 = vmatpush.msra.mxu0 %v334
        %605 = vmatpush.msra.mxu0 %v333
        %606 = vmatpush.msra.mxu0 %v332
        %607 = vmatmul.f32.gmra.mxu0 %v589
        %v608 = vpop.f32.mrf.mxu0
        %v609 = vadd.f32 0.0, %v608
        %610 = vdwg.mxu0
        %v611 = vadd.f32 %v321, %v609
        %v612 = vxor.u32 %v611, 2147483648
        %v613 = vmul.f32 %v612, 1.442695
        %v614 = vpow.pop %v613
        %v615 = vadd.f32 %v614, 1.0
        %v616 = vrcp.pop %v615
        %v617 = vmul.f32 %v615, %v616
        %v618 = vsub.f32 1.0, %v617
        %v619 = vmul.f32 %v616, %v618
        %v620 = vadd.f32 %v616, %v619
        %vm621 = vweird.f32 %v615
        %vm622 = vweird.f32 %v616
        %vm623 = vmor %vm621, %vm622
        %v624 = vsel %vm623, %v616, %v620
        %v625 = vand.u32 2147483647, %v615
        %vm626 = vcmp.eq.f32.partialorder %v625, 8.507059e+37
        %v627 = vand.u32 %v615, 2147483648
        %v628 = vor.u32 1.1754944e-38, %v627
        %v629 = vsel %vm626, %v628, %v624
        %v630 = vmul.f32 1.0, %v629
        %v631 = vtanh.pop %v611
        %v632 = vmul.f32 %v630, %v579
        %634 = vrot.lane.b32.xlu0 %v631, 64
        %v635 = vpop.permute.xlu0 %634
        %v637 = vmul.f32 %v630, %v635
        %639 = vrot.lane.b32.xlu0 %v637, 32
        %v640 = vpop.permute.xlu0 %639
        %v642 = vadd.f32 %v632, %v640
        %v643 = vtanh.pop %v642
        %645 = vrot.lane.b32.xlu0 %v643, 64
        %v646 = vpop.permute.xlu0 %645
        %v648 = vmul.f32 %v630, %v646
        %650 = vrot.lane.b32.xlu0 %v648, 32
        %v651 = vpop.permute.xlu0 %650
        %v652 = vsel %vm266, %v651, 0
        %654 = vmatpush.msra.mxu0 0.0
        %655 = vmatpush.msra.mxu0 0.0
        %656 = vmatpush.msra.mxu0 0.0
        %657 = vmatpush.msra.mxu0 0.0
        %658 = vmatpush.msra.mxu0 0.0
        %659 = vmatpush.msra.mxu0 0.0
        %660 = vmatpush.msra.mxu0 0.0
        %661 = vmatpush.msra.mxu0 0.0
        %662 = vmatpush.msra.mxu0 0.0
        %663 = vmatpush.msra.mxu0 0.0
        %664 = vmatpush.msra.mxu0 0.0
        %665 = vmatpush.msra.mxu0 0.0
        %666 = vmatpush.msra.mxu0 %v335
        %667 = vmatpush.msra.mxu0 %v334
        %668 = vmatpush.msra.mxu0 %v333
        %669 = vmatpush.msra.mxu0 %v332
        %670 = vmatmul.f32.gmra.mxu0 %v652
        %v671 = vpop.f32.mrf.mxu0
        %v672 = vadd.f32 0.0, %v671
        %673 = vdwg.mxu0
        %v674 = vadd.f32 %v324, %v672
        %v675 = vxor.u32 %v674, 2147483648
        %v676 = vmul.f32 %v675, 1.442695
        %v677 = vpow.pop %v676
        %v678 = vadd.f32 %v677, 1.0
        %v679 = vrcp.pop %v678
        %v680 = vmul.f32 %v678, %v679
        %v681 = vsub.f32 1.0, %v680
        %v682 = vmul.f32 %v679, %v681
        %v683 = vadd.f32 %v679, %v682
        %vm684 = vweird.f32 %v678
        %vm685 = vweird.f32 %v679
        %vm686 = vmor %vm684, %vm685
        %v687 = vsel %vm686, %v679, %v683
        %v688 = vand.u32 2147483647, %v678
        %vm689 = vcmp.eq.f32.partialorder %v688, 8.507059e+37
        %v690 = vand.u32 %v678, 2147483648
        %v691 = vor.u32 1.1754944e-38, %v690
        %v692 = vsel %vm689, %v691, %v687
        %v693 = vmul.f32 1.0, %v692
        %v694 = vtanh.pop %v674
        %v695 = vmul.f32 %v693, %v642
        %697 = vrot.lane.b32.xlu0 %v694, 64
        %v698 = vpop.permute.xlu0 %697
        %v700 = vmul.f32 %v693, %v698
        %702 = vrot.lane.b32.xlu0 %v700, 32
        %v703 = vpop.permute.xlu0 %702
        %v705 = vadd.f32 %v695, %v703
        %v706 = vtanh.pop %v705
        %708 = vrot.lane.b32.xlu0 %v706, 64
        %v709 = vpop.permute.xlu0 %708
        %v711 = vmul.f32 %v693, %v709
        %713 = vrot.lane.b32.xlu0 %v711, 32
        %v714 = vpop.permute.xlu0 %713
        %v715 = vsel %vm266, %v714, 0
        %717 = vmatpush.msra.mxu0 0.0
        %718 = vmatpush.msra.mxu0 0.0
        %719 = vmatpush.msra.mxu0 0.0
        %720 = vmatpush.msra.mxu0 0.0
        %721 = vmatpush.msra.mxu0 0.0
        %722 = vmatpush.msra.mxu0 0.0
        %723 = vmatpush.msra.mxu0 0.0
        %724 = vmatpush.msra.mxu0 0.0
        %725 = vmatpush.msra.mxu0 0.0
        %726 = vmatpush.msra.mxu0 0.0
        %727 = vmatpush.msra.mxu0 0.0
        %728 = vmatpush.msra.mxu0 0.0
        %729 = vmatpush.msra.mxu0 %v335
        %730 = vmatpush.msra.mxu0 %v334
        %731 = vmatpush.msra.mxu0 %v333
        %732 = vmatpush.msra.mxu0 %v332
        %733 = vmatmul.f32.gmra.mxu0 %v715
        %v734 = vpop.f32.mrf.mxu0
        %v735 = vadd.f32 0.0, %v734
        %736 = vdwg.mxu0
        %v737 = vadd.f32 %v327, %v735
        %v738 = vxor.u32 %v737, 2147483648
        %v739 = vmul.f32 %v738, 1.442695
        %v740 = vpow.pop %v739
        %v741 = vadd.f32 %v740, 1.0
        %v742 = vrcp.pop %v741
        %v743 = vmul.f32 %v741, %v742
        %v744 = vsub.f32 1.0, %v743
        %v745 = vmul.f32 %v742, %v744
        %v746 = vadd.f32 %v742, %v745
        %vm747 = vweird.f32 %v741
        %vm748 = vweird.f32 %v742
        %vm749 = vmor %vm747, %vm748
        %v750 = vsel %vm749, %v742, %v746
        %v751 = vand.u32 2147483647, %v741
        %vm752 = vcmp.eq.f32.partialorder %v751, 8.507059e+37
        %v753 = vand.u32 %v741, 2147483648
        %v754 = vor.u32 1.1754944e-38, %v753
        %v755 = vsel %vm752, %v754, %v750
        %v756 = vmul.f32 1.0, %v755
        %v757 = vtanh.pop %v737
        %v758 = vmul.f32 %v756, %v705
        %760 = vrot.lane.b32.xlu0 %v757, 64
        %v761 = vpop.permute.xlu0 %760
        %v763 = vmul.f32 %v756, %v761
        %765 = vrot.lane.b32.xlu0 %v763, 32
        %v766 = vpop.permute.xlu0 %765
        %v768 = vadd.f32 %v758, %v766
        %v769 = vtanh.pop %v768
        %771 = vrot.lane.b32.xlu0 %v769, 64
        %v772 = vpop.permute.xlu0 %771
        %v774 = vmul.f32 %v756, %v772
        %776 = vrot.lane.b32.xlu0 %v774, 32
        %v777 = vpop.permute.xlu0 %776
        %v778 = vsel %vm266, %v777, 0
        %780 = vmatpush.msra.mxu0 0.0
        %781 = vmatpush.msra.mxu0 0.0
        %782 = vmatpush.msra.mxu0 0.0
        %783 = vmatpush.msra.mxu0 0.0
        %784 = vmatpush.msra.mxu0 0.0
        %785 = vmatpush.msra.mxu0 0.0
        %786 = vmatpush.msra.mxu0 0.0
        %787 = vmatpush.msra.mxu0 0.0
        %788 = vmatpush.msra.mxu0 0.0
        %789 = vmatpush.msra.mxu0 0.0
        %790 = vmatpush.msra.mxu0 0.0
        %791 = vmatpush.msra.mxu0 0.0
        %792 = vmatpush.msra.mxu0 %v335
        %793 = vmatpush.msra.mxu0 %v334
        %794 = vmatpush.msra.mxu0 %v333
        %795 = vmatpush.msra.mxu0 %v332
        %796 = vmatmul.f32.gmra.mxu0 %v778
        %v797 = vpop.f32.mrf.mxu0
        %v798 = vadd.f32 0.0, %v797
        %799 = vdwg.mxu0
        %v800 = vadd.f32 %v330, %v798
        %v801 = vxor.u32 %v800, 2147483648
        %v802 = vmul.f32 %v801, 1.442695
        %v803 = vpow.pop %v802
        %v804 = vadd.f32 %v803, 1.0
        %v805 = vrcp.pop %v804
        %v806 = vmul.f32 %v804, %v805
        %v807 = vsub.f32 1.0, %v806
        %v808 = vmul.f32 %v805, %v807
        %v809 = vadd.f32 %v805, %v808
        %vm810 = vweird.f32 %v804
        %vm811 = vweird.f32 %v805
        %vm812 = vmor %vm810, %vm811
        %v813 = vsel %vm812, %v805, %v809
        %v814 = vand.u32 2147483647, %v804
        %vm815 = vcmp.eq.f32.partialorder %v814, 8.507059e+37
        %v816 = vand.u32 %v804, 2147483648
        %v817 = vor.u32 1.1754944e-38, %v816
        %v818 = vsel %vm815, %v817, %v813
        %v819 = vmul.f32 1.0, %v818
        %v820 = vtanh.pop %v800
        %v821 = vmul.f32 %v819, %v768
        %823 = vrot.lane.b32.xlu0 %v820, 64
        %v824 = vpop.permute.xlu0 %823
        %v826 = vmul.f32 %v819, %v824
        %828 = vrot.lane.b32.xlu0 %v826, 32
        %v829 = vpop.permute.xlu0 %828
        %v831 = vadd.f32 %v821, %v829
        %v832 = vtanh.pop %v831
        %834 = vrot.lane.b32.xlu0 %v832, 64
        %v835 = vpop.permute.xlu0 %834
        %v837 = vmul.f32 %v819, %v835
        %v838 = vld [vmem:[%s4] sm:$0xff]
        %v839 = vld [vmem:[%s4 + $0x8] sm:$0xff]
        %v840 = vld [vmem:[%s4 + $0x10] sm:$0xff]
        %v841 = vld [vmem:[%s4 + $0x18] sm:$0xff]
        %v842 = vld [vmem:[%s5] sm:$0x1]
        %v844 = vperm.slane %v842, 0
        %847 = vrot.lane.b32.xlu0 %v837, 32
        %v848 = vpop.permute.xlu0 %847
        %v849 = vsel %vm266, %v848, 0
        %851 = vmatpush.msra.mxu0 0.0
        %852 = vmatpush.msra.mxu0 0.0
        %853 = vmatpush.msra.mxu0 0.0
        %854 = vmatpush.msra.mxu0 0.0
        %855 = vmatpush.msra.mxu0 0.0
        %856 = vmatpush.msra.mxu0 0.0
        %857 = vmatpush.msra.mxu0 0.0
        %858 = vmatpush.msra.mxu0 0.0
        %859 = vmatpush.msra.mxu0 0.0
        %860 = vmatpush.msra.mxu0 0.0
        %861 = vmatpush.msra.mxu0 0.0
        %862 = vmatpush.msra.mxu0 0.0
        %863 = vmatpush.msra.mxu0 %v841
        %864 = vmatpush.msra.mxu0 %v840
        %865 = vmatpush.msra.mxu0 %v839
        %866 = vmatpush.msra.mxu0 %v838
        %867 = vmatmul.f32.gmra.mxu0 %v400
        %v868 = vpop.f32.mrf.mxu0
        %v869 = vadd.f32 %v844, %v868
        %870 = vmatmul.f32.gmra.mxu0 %v463
        %v871 = vpop.f32.mrf.mxu0
        %v872 = vadd.f32 %v844, %v871
        %873 = vmatmul.f32.gmra.mxu0 %v526
        %v874 = vpop.f32.mrf.mxu0
        %v875 = vadd.f32 %v844, %v874
        %876 = vmatmul.f32.gmra.mxu0 %v589
        %v877 = vpop.f32.mrf.mxu0
        %v878 = vadd.f32 %v844, %v877
        %879 = vmatmul.f32.gmra.mxu0 %v652
        %v880 = vpop.f32.mrf.mxu0
        %v881 = vadd.f32 %v844, %v880
        %882 = vmatmul.f32.gmra.mxu0 %v715
        %v883 = vpop.f32.mrf.mxu0
        %v884 = vadd.f32 %v844, %v883
        %885 = vmatmul.f32.gmra.mxu0 %v778
        %v886 = vpop.f32.mrf.mxu0
        %v887 = vadd.f32 %v844, %v886
        %888 = vmatmul.f32.gmra.mxu0 %v849
        %v889 = vpop.f32.mrf.mxu0
        %v890 = vadd.f32 %v844, %v889
        %891 = vdwg.mxu0
        %892 = vmax.xlane.f32.xlu0 %v869
        %v893 = vpop.xlane.xlu0 %892
        %894 = vmax.xlane.f32.xlu0 %v872
        %v895 = vpop.xlane.xlu0 %894
        %896 = vmax.xlane.f32.xlu0 %v875
        %v897 = vpop.xlane.xlu0 %896
        %898 = vmax.xlane.f32.xlu0 %v878
        %v899 = vpop.xlane.xlu0 %898
        %900 = vmax.xlane.f32.xlu0 %v881
        %v901 = vpop.xlane.xlu0 %900
        %902 = vmax.xlane.f32.xlu0 %v884
        %v903 = vpop.xlane.xlu0 %902
        %904 = vmax.xlane.f32.xlu0 %v887
        %v905 = vpop.xlane.xlu0 %904
        %906 = vmax.xlane.f32.xlu0 %v890
        %v907 = vpop.xlane.xlu0 %906
        %v908 = vsub.f32 %v869, %v893
        %v909 = vsub.f32 %v872, %v895
        %v910 = vsub.f32 %v875, %v897
        %v911 = vsub.f32 %v878, %v899
        %v912 = vsub.f32 %v881, %v901
        %v913 = vsub.f32 %v884, %v903
        %v914 = vsub.f32 %v887, %v905
        %v915 = vsub.f32 %v890, %v907
        %v916 = vmul.f32 %v908, 1.442695
        %v917 = vpow.pop %v916
        %v918 = vmul.f32 %v909, 1.442695
        %v919 = vpow.pop %v918
        %v920 = vmul.f32 %v910, 1.442695
        %v921 = vpow.pop %v920
        %v922 = vmul.f32 %v911, 1.442695
        %v923 = vpow.pop %v922
        %v924 = vmul.f32 %v912, 1.442695
        %v925 = vpow.pop %v924
        %v926 = vmul.f32 %v913, 1.442695
        %v927 = vpow.pop %v926
        %v928 = vmul.f32 %v914, 1.442695
        %v929 = vpow.pop %v928
        %v930 = vmul.f32 %v915, 1.442695
        %v931 = vpow.pop %v930
        %932 = vadd.xlane.f32.xlu0 %v917
        %v933 = vpop.xlane.xlu0 %932
        %934 = vadd.xlane.f32.xlu0 %v919
        %v935 = vpop.xlane.xlu0 %934
        %936 = vadd.xlane.f32.xlu0 %v921
        %v937 = vpop.xlane.xlu0 %936
        %938 = vadd.xlane.f32.xlu0 %v923
        %v939 = vpop.xlane.xlu0 %938
        %940 = vadd.xlane.f32.xlu0 %v925
        %v941 = vpop.xlane.xlu0 %940
        %942 = vadd.xlane.f32.xlu0 %v927
        %v943 = vpop.xlane.xlu0 %942
        %944 = vadd.xlane.f32.xlu0 %v929
        %v945 = vpop.xlane.xlu0 %944
        %946 = vadd.xlane.f32.xlu0 %v931
        %v947 = vpop.xlane.xlu0 %946
        %v948 = vlog2.pop %v933
        %v949 = vmul.f32 %v948, 0.6931472
        %v950 = vlog2.pop %v935
        %v951 = vmul.f32 %v950, 0.6931472
        %v952 = vlog2.pop %v937
        %v953 = vmul.f32 %v952, 0.6931472
        %v954 = vlog2.pop %v939
        %v955 = vmul.f32 %v954, 0.6931472
        %v956 = vlog2.pop %v941
        %v957 = vmul.f32 %v956, 0.6931472
        %v958 = vlog2.pop %v943
        %v959 = vmul.f32 %v958, 0.6931472
        %v960 = vlog2.pop %v945
        %v961 = vmul.f32 %v960, 0.6931472
        %v962 = vlog2.pop %v947
        %v963 = vmul.f32 %v962, 0.6931472
        %v964 = vsub.f32 %v908, %v949
        %v965 = vsub.f32 %v909, %v951
        %v966 = vsub.f32 %v910, %v953
        %v967 = vsub.f32 %v911, %v955
        %v968 = vsub.f32 %v912, %v957
        %v969 = vsub.f32 %v913, %v959
        %v970 = vsub.f32 %v914, %v961
        %v971 = vsub.f32 %v915, %v963
        %972 = vst [vmem:[%s244] sm:$0xff] %v964
        %973 = vst [vmem:[%s244 + $0x8] sm:$0xff] %v965
        %974 = vst [vmem:[%s244 + $0x10] sm:$0xff] %v966
        %975 = vst [vmem:[%s244 + $0x18] sm:$0xff] %v967
        %976 = vst [vmem:[%s244 + $0x20] sm:$0xff] %v968
        %977 = vst [vmem:[%s244 + $0x28] sm:$0xff] %v969
        %978 = vst [vmem:[%s244 + $0x30] sm:$0xff] %v970
        %979 = vst [vmem:[%s244 + $0x38] sm:$0xff] %v971
        %s980 = sand.u32 %s159, 1
        %s981 = scalar_lea.sflag [#allocation3], %s980
        %s982 = sand.u32 %s159, 1
        %s983 = smul.addr %s982, 64
        %s984 = scalar_lea.vmem [#allocation2], %s983
        // Predicated region
        $region45: #{tpu_custom_call.1} parent=43 // pred_check
          %p985 = pneg %p169
        $region46: #{tpu_custom_call.1} parent=43 // pred_check_branch
          %987 = sbr.rel (%p985) target = $region48
        $region47: #{tpu_custom_call.1} parent=43 // pred_region
          %989 = vsyncadd %s981, 0
          %s990 = smul.addr %s20, 8
          %s991 = smul.addr %s990, 8
          %s992 = scalar_lea.hbm %s6, %s991
          %s993 = sshll.u32 %s984, 4
          %s994 = int_to_ptr.vmem [resolvable:$true] %s993
          %s995 = sshll.u32 %s992, 4
          %s996 = int_to_ptr.hbm [resolvable:$true] %s995
          %1001 = dma.vmem_to_hbm [thread:$0]  %s994, 1024, %s996, %s981, 128, 128, 8
        $region48: #{tpu_custom_call.1} parent=43 // pred_fallthru
          _
      $region44: #{tpu_custom_call.1} parent=5 // pred_fallthru
        _
      %p1002 = scmp.le.s32.totalorder 2, %s15
      // Predicated region
      $region49: #{tpu_custom_call.1} parent=5 // pred_check
        %p1003 = pneg %p1002
      $region50: #{tpu_custom_call.1} parent=5 // pred_check_branch
        %1005 = sbr.rel (%p1003) target = $region52
      $region51: #{tpu_custom_call.1} parent=5 // pred_region
        %s1006 = ssub.s32 %s15, 2
        // Predicated region
        $region53: #{tpu_custom_call.1} parent=51 // pred_check
          %p1007 = pneg %p175
        $region54: #{tpu_custom_call.1} parent=51 // pred_check_branch
          %1009 = sbr.rel (%p1007) target = $region56
        $region55: #{tpu_custom_call.1} parent=51 // pred_region
          %s1010 = sand.u32 %s160, 1
          %s1011 = scalar_lea.sflag [#allocation3], %s1010
          %s1012 = sand.u32 %s160, 1
          %s1013 = smul.addr %s1012, 64
          %s1014 = scalar_lea.vmem [#allocation2], %s1013
          %1016 = dma.done %s1011, 1024
        $region56: #{tpu_custom_call.1} parent=51 // pred_fallthru
          _
      $region52: #{tpu_custom_call.1} parent=5 // pred_fallthru
        _
    $region6: #{tpu_custom_call.1} parent=1 // loop_footer
      %s19 = sadd.s32 1, %s15
    $region7: #{tpu_custom_call.1} parent=1 // loop_footer_branch
      %14 = sbr.rel target = $region3
    $region8: #{tpu_custom_call.1} parent=1 // loop_exit
      _
    %1017 = vsyncpa [#allocation3], 1
    %s1018 = scalar_lea.sflag [#allocation3], 1
    %1019 = vsyncpa %s1018, 1

</llo_original>
